<compile_context>
chip_gen: v7x
topology: tpu7x:2x2x1
jax: 0.10.0
libtpu: 0.0.40
codegen_flags: <defaults>
</compile_context>

<pallas_src>
import jax
import jax.numpy as jnp
import numpy as np
from jax.experimental import pallas as pl
from jax.experimental.pallas import tpu as pltpu

N_GENT = 50      # generator input dim
HIDDEN = 128     # hidden dim of map1
SAMPLE_NUM = 50  # output dim of map2

TB_MAX = 8192    # batch (lane) tile; ~3.3 MiB of double-buffered tiles at bf16


def _round_up(x, m):
    return (x + m - 1) // m * m


def _generator_kernel(xt_ref, w1t_ref, b1_ref, w2t_ref, b2_ref, ot_ref):
    # h^T = W1^T @ x^T  : (HIDDEN, TB), bf16 operands, f32 accumulation on the MXU.
    h = jnp.dot(w1t_ref[...], xt_ref[...], preferred_element_type=jnp.float32)
    h = jnp.maximum(h + b1_ref[...], 0.0)            # b1 is (HIDDEN, 1), broadcasts over lanes
    # y^T = W2^T @ h^T  : (SAMPLE_NUM, TB), lane-dense store (batch = lane dim).
    y = jnp.dot(w2t_ref[...], h.astype(w2t_ref.dtype),
                preferred_element_type=jnp.float32)
    ot_ref[...] = (y + b2_ref[...]).astype(ot_ref.dtype)


def prepare_params(w1, b1, w2, b2):
    """One-time weight prep for the feature-major kernel.

    w1: (N_GENT, HIDDEN), b1: (HIDDEN,), w2: (HIDDEN, SAMPLE_NUM), b2: (SAMPLE_NUM,).
    Weights are stored transposed and cast to bf16; biases stay f32 column vectors.
    """
    w1t = jnp.asarray(w1, jnp.bfloat16).T                      # (HIDDEN, N_GENT)
    b1c = jnp.asarray(b1, jnp.float32).reshape(HIDDEN, 1)      # (HIDDEN, 1)
    w2t = jnp.asarray(w2, jnp.bfloat16).T                      # (SAMPLE_NUM, HIDDEN)
    b2c = jnp.asarray(b2, jnp.float32).reshape(SAMPLE_NUM, 1)  # (SAMPLE_NUM, 1)
    return w1t, b1c, w2t, b2c


def make_noise(key, batch):
    """Generator noise directly in the kernel's feature-major layout: bf16 (N_GENT, batch).

    `batch` should be a multiple of 128 so the fast path needs no padding/layout ops.
    """
    return jax.random.normal(key, (N_GENT, batch), jnp.float32).astype(jnp.bfloat16)


def generator_forward_t(x_t, params, *, out_dtype=jnp.bfloat16, tb_max=TB_MAX):
    """Fast path. x_t: bf16 (N_GENT, Bp) feature-major, Bp a multiple of 128.

    Returns the raw (SAMPLE_NUM, Bp) slab in `out_dtype` (no post-kernel slice);
    downstream code should consume it feature-major (column j = sample j).
    """
    w1t, b1c, w2t, b2c = params
    K, Bp = x_t.shape
    if K != N_GENT:
        raise ValueError(f"x_t must have {N_GENT} feature rows, got {K}")
    if Bp % 128 != 0:
        raise ValueError("batch (lane) dim of x_t must be a multiple of 128")

    TB = min(Bp, tb_max)
    grid = (pl.cdiv(Bp, TB),)

    out_itemsize = np.dtype(out_dtype).itemsize
    flops = 2 * Bp * HIDDEN * (N_GENT + SAMPLE_NUM)
    bytes_accessed = (x_t.size * 2 + w1t.size * 2 + w2t.size * 2
                      + b1c.size * 4 + b2c.size * 4
                      + SAMPLE_NUM * Bp * out_itemsize)

    return pl.pallas_call(
        _generator_kernel,
        out_shape=jax.ShapeDtypeStruct((SAMPLE_NUM, Bp), out_dtype),
        grid=grid,
        in_specs=[
            pl.BlockSpec((N_GENT, TB), lambda i: (0, i)),        # x^T: tiled over batch lanes
            pl.BlockSpec((HIDDEN, N_GENT), lambda i: (0, 0)),    # W1^T: resident across grid
            pl.BlockSpec((HIDDEN, 1), lambda i: (0, 0)),         # b1: resident
            pl.BlockSpec((SAMPLE_NUM, HIDDEN), lambda i: (0, 0)),# W2^T: resident
            pl.BlockSpec((SAMPLE_NUM, 1), lambda i: (0, 0)),     # b2: resident
        ],
        out_specs=pl.BlockSpec((SAMPLE_NUM, TB), lambda i: (0, i)),
        compiler_params=pltpu.CompilerParams(
            dimension_semantics=("parallel",)),
        cost_estimate=pl.CostEstimate(
            flops=flops, transcendentals=0, bytes_accessed=bytes_accessed),
    )(x_t, w1t, b1c, w2t, b2c)


def generator_forward(x, params, *, out_dtype=jnp.float32):
    """Module-identical interface: x (B, N_GENT) f32 -> (B, SAMPLE_NUM).

    Convenience wrapper: does one transpose/pad pass on each side. Perf-critical
    callers should use make_noise() + generator_forward_t() and skip both.
    """
    B = x.shape[0]
    Bp = _round_up(max(B, 1), 128)
    x_t = jnp.zeros((N_GENT, Bp), jnp.bfloat16).at[:, :B].set(
        x.astype(jnp.bfloat16).T)
    out_t = generator_forward_t(x_t, params)           # (SAMPLE_NUM, Bp) bf16
    return out_t[:, :B].T.astype(out_dtype)


def init_params(key):
    """Deterministic init matching nn.Linear shapes (stored as (in, out))."""
    k1, k2, k3, k4 = jax.random.split(key, 4)
    lim1 = 1.0 / jnp.sqrt(jnp.float32(N_GENT))    # PyTorch default: U(-1/sqrt(fan_in), +)
    lim2 = 1.0 / jnp.sqrt(jnp.float32(HIDDEN))
    w1 = jax.random.uniform(k1, (N_GENT, HIDDEN), jnp.float32, -lim1, lim1)
    b1 = jax.random.uniform(k2, (HIDDEN,), jnp.float32, -lim1, lim1)
    w2 = jax.random.uniform(k3, (HIDDEN, SAMPLE_NUM), jnp.float32, -lim2, lim2)
    b2 = jax.random.uniform(k4, (SAMPLE_NUM,), jnp.float32, -lim2, lim2)
    return w1, b1, w2, b2


if __name__ == "__main__":
    key = jax.random.PRNGKey(0)
    kx, kp, kn = jax.random.split(key, 3)

    w1, b1, w2, b2 = init_params(kp)
    params = prepare_params(w1, b1, w2, b2)

    # Reference mirroring the kernel precision (bf16 operands, f32 accumulate, bf16 store).
    def ref_bf16_fn(xf):
        xb = xf.astype(jnp.bfloat16).astype(jnp.float32)
        w1b = w1.astype(jnp.bfloat16).astype(jnp.float32)
        w2b = w2.astype(jnp.bfloat16).astype(jnp.float32)
        h = jnp.maximum(xb @ w1b + b1, 0.0)
        y = h.astype(jnp.bfloat16).astype(jnp.float32) @ w2b + b2
        return y.astype(jnp.bfloat16).astype(jnp.float32)

    # --- Module-identical interface: (B, 50) -> (B, 50) ---------------------------
    B = 8  # tiny batch: this path is dispatch-bound by design; use the fast path below for perf
    x = jax.random.normal(kx, (B, N_GENT), jnp.float32)
    out = generator_forward(x, params)
    jax.block_until_ready(out)
    assert out.shape == (B, SAMPLE_NUM)

    ref = ref_bf16_fn(x)
    assert jnp.allclose(out, ref, atol=2e-2, rtol=2e-2), \
        float(jnp.max(jnp.abs(out - ref)))

    # Loose check vs the original full-f32 PyTorch semantics (bf16 quantization only).
    ref_f32 = jnp.maximum(x @ w1 + b1, 0.0) @ w2 + b2
    assert jnp.allclose(out, ref_f32, atol=8e-2, rtol=8e-2), \
        float(jnp.max(jnp.abs(out - ref_f32)))

    # --- Fast path: feature-major noise, no layout ops, padded slab out -----------
    Bp = 256
    x_t = make_noise(kn, Bp)                          # bf16 (N_GENT, Bp)
    out_t = generator_forward_t(x_t, params)          # bf16 (SAMPLE_NUM, Bp)
    jax.block_until_ready(out_t)
    assert out_t.shape == (SAMPLE_NUM, Bp) and out_t.dtype == jnp.bfloat16

    ref_t = ref_bf16_fn(x_t.astype(jnp.float32).T).T
    assert jnp.allclose(out_t.astype(jnp.float32), ref_t, atol=2e-2, rtol=2e-2), \
        float(jnp.max(jnp.abs(out_t.astype(jnp.float32) - ref_t)))

    print("KERNEL_OK")
</pallas_src>

<mosaic_0001>
module attributes {stable_mosaic.version = 11 : i64} {
  func.func @_generator_kernel(%arg0: i32, %arg1: memref<50x128xbf16, #tpu.memory_space<vmem>>, %arg2: memref<128x50xbf16, #tpu.memory_space<vmem>>, %arg3: memref<128x1xf32, #tpu.memory_space<vmem>>, %arg4: memref<50x128xbf16, #tpu.memory_space<vmem>>, %arg5: memref<50x1xf32, #tpu.memory_space<vmem>>, %arg6: memref<50x128xbf16, #tpu.memory_space<vmem>>) attributes {dimension_semantics = [#tpu.dimension_semantics<parallel>], iteration_bounds = array<i64: 1>, scalar_prefetch = 0 : i64, scratch_operands = 0 : i64, tpu.core_type = #tpu.core_type<tc>, window_params = [{transform_indices = @transform_0, window_bounds = array<i64: 50, 128>}, {pipeline_mode = #tpu.pipeline_mode<synchronous>, transform_indices = @transform_1, window_bounds = array<i64: 128, 50>}, {pipeline_mode = #tpu.pipeline_mode<synchronous>, transform_indices = @transform_2, window_bounds = array<i64: 128, 1>}, {pipeline_mode = #tpu.pipeline_mode<synchronous>, transform_indices = @transform_3, window_bounds = array<i64: 50, 128>}, {pipeline_mode = #tpu.pipeline_mode<synchronous>, transform_indices = @transform_4, window_bounds = array<i64: 50, 1>}, {transform_indices = @transform_5, window_bounds = array<i64: 50, 128>}]} {
    %c0 = arith.constant 0 : index
    %c0_0 = arith.constant 0 : index
    %0 = vector.load %arg2[%c0, %c0_0] : memref<128x50xbf16, #tpu.memory_space<vmem>>, vector<128x50xbf16>
    %c0_1 = arith.constant 0 : index
    %c0_2 = arith.constant 0 : index
    %1 = vector.load %arg1[%c0_1, %c0_2] : memref<50x128xbf16, #tpu.memory_space<vmem>>, vector<50x128xbf16>
    %cst = arith.constant dense<0.000000e+00> : vector<128x128xf32>
    %2 = tpu.matmul %0, %1, %cst {dimension_numbers = #tpu.dot_dimension_numbers<[1], [0], [0], [1], [0, 0, 1, 1], [], []>} : vector<128x50xbf16>, vector<50x128xbf16>, vector<128x128xf32> -> vector<128x128xf32>
    %c0_3 = arith.constant 0 : index
    %c0_4 = arith.constant 0 : index
    %3 = vector.load %arg3[%c0_3, %c0_4] : memref<128x1xf32, #tpu.memory_space<vmem>>, vector<128x1xf32>
    %4 = vector.broadcast %3 : vector<128x1xf32> to vector<128x128xf32>
    %5 = arith.addf %2, %4 : vector<128x128xf32>
    %cst_5 = arith.constant 0.000000e+00 : f32
    %6 = vector.broadcast %cst_5 : f32 to vector<128x128xf32>
    %7 = arith.maximumf %5, %6 : vector<128x128xf32>
    %c0_6 = arith.constant 0 : index
    %c0_7 = arith.constant 0 : index
    %8 = vector.load %arg4[%c0_6, %c0_7] : memref<50x128xbf16, #tpu.memory_space<vmem>>, vector<50x128xbf16>
    %9 = arith.truncf %7 : vector<128x128xf32> to vector<128x128xbf16>
    %cst_8 = arith.constant dense<0.000000e+00> : vector<50x128xf32>
    %10 = tpu.matmul %8, %9, %cst_8 {dimension_numbers = #tpu.dot_dimension_numbers<[1], [0], [0], [1], [0, 0, 1, 1], [], []>} : vector<50x128xbf16>, vector<128x128xbf16>, vector<50x128xf32> -> vector<50x128xf32>
    %c0_9 = arith.constant 0 : index
    %c0_10 = arith.constant 0 : index
    %11 = vector.load %arg5[%c0_9, %c0_10] : memref<50x1xf32, #tpu.memory_space<vmem>>, vector<50x1xf32>
    %12 = vector.broadcast %11 : vector<50x1xf32> to vector<50x128xf32>
    %13 = arith.addf %10, %12 : vector<50x128xf32>
    %14 = arith.truncf %13 : vector<50x128xf32> to vector<50x128xbf16>
    %c0_11 = arith.constant 0 : index
    %c0_12 = arith.constant 0 : index
    %15 = vector.load %arg6[%c0_11, %c0_12] : memref<50x128xbf16, #tpu.memory_space<vmem>>, vector<50x128xbf16>
    tpu.vector_store %arg6[%c0_11, %c0_12], %14 {strides = array<i32>} : memref<50x128xbf16, #tpu.memory_space<vmem>>, vector<50x128xbf16>,
    return
  }
  func.func @transform_0(%arg0: i32) -> (i32, i32) {
    %c0_i32 = arith.constant 0 : i32
    %c0_i32_0 = arith.constant 0 : i32
    return %c0_i32, %arg0 : i32, i32
  }
  func.func @transform_1(%arg0: i32) -> (i32, i32) {
    %c0_i32 = arith.constant 0 : i32
    %c0_i32_0 = arith.constant 0 : i32
    %c0_i32_1 = arith.constant 0 : i32
    return %c0_i32, %c0_i32_0 : i32, i32
  }
  func.func @transform_2(%arg0: i32) -> (i32, i32) {
    %c0_i32 = arith.constant 0 : i32
    %c0_i32_0 = arith.constant 0 : i32
    %c0_i32_1 = arith.constant 0 : i32
    return %c0_i32, %c0_i32_0 : i32, i32
  }
  func.func @transform_3(%arg0: i32) -> (i32, i32) {
    %c0_i32 = arith.constant 0 : i32
    %c0_i32_0 = arith.constant 0 : i32
    %c0_i32_1 = arith.constant 0 : i32
    return %c0_i32, %c0_i32_0 : i32, i32
  }
  func.func @transform_4(%arg0: i32) -> (i32, i32) {
    %c0_i32 = arith.constant 0 : i32
    %c0_i32_0 = arith.constant 0 : i32
    %c0_i32_1 = arith.constant 0 : i32
    return %c0_i32, %c0_i32_0 : i32, i32
  }
  func.func @transform_5(%arg0: i32) -> (i32, i32) {
    %c0_i32 = arith.constant 0 : i32
    %c0_i32_0 = arith.constant 0 : i32
    return %c0_i32, %arg0 : i32, i32
  }
}

</mosaic_0001>

<llo_original>
// kernel: tpu_custom_call.1
$region0: #{tpu_custom_call.1}
  #allocation0 [shape = 'u32[]', space=smem, size = 0x4, offset = 0x4, fixed_abs, tag = 'smem constant byte address 0x4 - core index']
  #allocation1 [shape = 'u32[144,128]{1,0:T(1,128)}', space=vmem, size = 0x12000, scoped, tag = 'internal scratch']
  %s0 = inlined_call_operand.vmem [shape: bf16[50,128], index: 0, kind: input, shape index: {}]
  %s1 = inlined_call_operand.vmem [shape: bf16[128,50], index: 1, kind: input, shape index: {}]
  %s2 = inlined_call_operand.vmem [shape: f32[128,1], index: 2, kind: input, shape index: {}]
  %s3 = inlined_call_operand.vmem [shape: bf16[50,128], index: 3, kind: input, shape index: {}]
  %s4 = inlined_call_operand.vmem [shape: f32[50,1], index: 4, kind: input, shape index: {}]
  %s5 = inlined_call_operand.hbm [shape: bf16[50,128], index: 5, kind: output, shape index: {}]
  %s6 = sld [smem:[#allocation0]]
  $region30: #{tpu_custom_call.1} parent=0
    _
  %s8 = ssub.s32 1, %s6
  %s9 = scalar_select 0, %s8, %s6
  $region1: #{tpu_custom_call.1} parent=0
    #allocation2 [shape = 'u8[14336]{0}', space=vmem, size = 0x3800, scoped, tag = 'output window, operand 0, single buffered']
    #allocation3 [shape = 's32[1]{0}', space=sflag, size = 0x4, scoped, tag = 'scoped memory for tpu_custom_call.1']
    %10 = vsyncpa [#allocation3], 0
    // Predicated region
    $region2: #{tpu_custom_call.1} parent=1 // pred_check
      _
    $region3: #{tpu_custom_call.1} parent=1 // pred_check_branch
      %12 = sbr.rel (0) target = $region5
    $region4: #{tpu_custom_call.1} parent=1 // pred_region
      _
    $region5: #{tpu_custom_call.1} parent=1 // pred_fallthru
      _
    // Predicated region
    $region6: #{tpu_custom_call.1} parent=1 // pred_check
      _
    $region7: #{tpu_custom_call.1} parent=1 // pred_check_branch
      %14 = sbr.rel (0) target = $region9
    $region8: #{tpu_custom_call.1} parent=1 // pred_region
      _
    $region9: #{tpu_custom_call.1} parent=1 // pred_fallthru
      _
    // Predicated region
    $region10: #{tpu_custom_call.1} parent=1 // pred_check
      _
    $region11: #{tpu_custom_call.1} parent=1 // pred_check_branch
      %16 = sbr.rel (0) target = $region13
    $region12: #{tpu_custom_call.1} parent=1 // pred_region
      _
    $region13: #{tpu_custom_call.1} parent=1 // pred_fallthru
      _
    // Predicated region
    $region14: #{tpu_custom_call.1} parent=1 // pred_check
      _
    $region15: #{tpu_custom_call.1} parent=1 // pred_check_branch
      %18 = sbr.rel (0) target = $region17
    $region16: #{tpu_custom_call.1} parent=1 // pred_region
      _
    $region17: #{tpu_custom_call.1} parent=1 // pred_fallthru
      _
    // Predicated region
    $region18: #{tpu_custom_call.1} parent=1 // pred_check
      _
    $region19: #{tpu_custom_call.1} parent=1 // pred_check_branch
      %20 = sbr.rel (0) target = $region21
    $region20: #{tpu_custom_call.1} parent=1 // pred_region
      _
    $region21: #{tpu_custom_call.1} parent=1 // pred_fallthru
      _
    %v22 = vld [vmem:[%s1] sm:$0xf]
    %v23 = vld [vmem:[%s1 + $0x4] sm:$0xf]
    %v24 = vld [vmem:[%s1 + $0x8] sm:$0xf]
    %v25 = vld [vmem:[%s1 + $0xc] sm:$0xf]
    %v26 = vld [vmem:[%s1 + $0x10] sm:$0xf]
    %v27 = vld [vmem:[%s1 + $0x14] sm:$0xf]
    %v28 = vld [vmem:[%s1 + $0x18] sm:$0xf]
    %v29 = vld [vmem:[%s1 + $0x1c] sm:$0xf]
    %v30 = vld [vmem:[%s1 + $0x20] sm:$0xf]
    %v31 = vld [vmem:[%s1 + $0x24] sm:$0xf]
    %v32 = vld [vmem:[%s1 + $0x28] sm:$0xf]
    %v33 = vld [vmem:[%s1 + $0x2c] sm:$0xf]
    %v34 = vld [vmem:[%s1 + $0x30] sm:$0xf]
    %v35 = vld [vmem:[%s1 + $0x34] sm:$0xf]
    %v36 = vld [vmem:[%s1 + $0x38] sm:$0xf]
    %v37 = vld [vmem:[%s1 + $0x3c] sm:$0xf]
    %v38 = vld [vmem:[%s0] sm:$0xf]
    %v39 = vld [vmem:[%s0 + $0x4] sm:$0xf]
    %v40 = vld [vmem:[%s0 + $0x8] sm:$0xf]
    %v41 = vld [vmem:[%s0 + $0xc] sm:$0xf]
    %v42 = vld [vmem:[%s0 + $0x10] sm:$0xf]
    %v43 = vld [vmem:[%s0 + $0x14] sm:$0xf]
    %v44 = vld [vmem:[%s0 + $0x18] sm:$0x1]
    %v45 = vld [vmem:[%s2] sm:$0xff]
    %v46 = vld [vmem:[%s2 + $0x8] sm:$0xff]
    %v47 = vld [vmem:[%s2 + $0x10] sm:$0xff]
    %v48 = vld [vmem:[%s2 + $0x18] sm:$0xff]
    %v49 = vld [vmem:[%s2 + $0x20] sm:$0xff]
    %v50 = vld [vmem:[%s2 + $0x28] sm:$0xff]
    %v51 = vld [vmem:[%s2 + $0x30] sm:$0xff]
    %v52 = vld [vmem:[%s2 + $0x38] sm:$0xff]
    %v53 = vld [vmem:[%s2 + $0x40] sm:$0xff]
    %v54 = vld [vmem:[%s2 + $0x48] sm:$0xff]
    %v55 = vld [vmem:[%s2 + $0x50] sm:$0xff]
    %v56 = vld [vmem:[%s2 + $0x58] sm:$0xff]
    %v57 = vld [vmem:[%s2 + $0x60] sm:$0xff]
    %v58 = vld [vmem:[%s2 + $0x68] sm:$0xff]
    %v59 = vld [vmem:[%s2 + $0x70] sm:$0xff]
    %v60 = vld [vmem:[%s2 + $0x78] sm:$0xff]
    %62 = vset.pattern.permute.xlu0 0
    %63 = vperm.xlu0 %62, %v45
    %v64 = vpop.permute.xlu0 %63
    %67 = vset.pattern.permute.xlu0 0
    %68 = vperm.xlu0 %67, %v46
    %v69 = vpop.permute.xlu0 %68
    %72 = vset.pattern.permute.xlu0 0
    %73 = vperm.xlu0 %72, %v47
    %v74 = vpop.permute.xlu0 %73
    %77 = vset.pattern.permute.xlu0 0
    %78 = vperm.xlu0 %77, %v48
    %v79 = vpop.permute.xlu0 %78
    %82 = vset.pattern.permute.xlu0 0
    %83 = vperm.xlu0 %82, %v49
    %v84 = vpop.permute.xlu0 %83
    %87 = vset.pattern.permute.xlu0 0
    %88 = vperm.xlu0 %87, %v50
    %v89 = vpop.permute.xlu0 %88
    %92 = vset.pattern.permute.xlu0 0
    %93 = vperm.xlu0 %92, %v51
    %v94 = vpop.permute.xlu0 %93
    %97 = vset.pattern.permute.xlu0 0
    %98 = vperm.xlu0 %97, %v52
    %v99 = vpop.permute.xlu0 %98
    %102 = vset.pattern.permute.xlu0 0
    %103 = vperm.xlu0 %102, %v53
    %v104 = vpop.permute.xlu0 %103
    %107 = vset.pattern.permute.xlu0 0
    %108 = vperm.xlu0 %107, %v54
    %v109 = vpop.permute.xlu0 %108
    %112 = vset.pattern.permute.xlu0 0
    %113 = vperm.xlu0 %112, %v55
    %v114 = vpop.permute.xlu0 %113
    %117 = vset.pattern.permute.xlu0 0
    %118 = vperm.xlu0 %117, %v56
    %v119 = vpop.permute.xlu0 %118
    %122 = vset.pattern.permute.xlu0 0
    %123 = vperm.xlu0 %122, %v57
    %v124 = vpop.permute.xlu0 %123
    %127 = vset.pattern.permute.xlu0 0
    %128 = vperm.xlu0 %127, %v58
    %v129 = vpop.permute.xlu0 %128
    %132 = vset.pattern.permute.xlu0 0
    %133 = vperm.xlu0 %132, %v59
    %v134 = vpop.permute.xlu0 %133
    %137 = vset.pattern.permute.xlu0 0
    %138 = vperm.xlu0 %137, %v60
    %v139 = vpop.permute.xlu0 %138
    %v157 = vunpack.c.l.b16 %v22
    %v158 = vunpack.c.l.b16 %v23
    %v159 = vunpack.c.l.b16 %v24
    %v160 = vunpack.c.l.b16 %v25
    %v161 = vunpack.c.l.b16 %v26
    %v162 = vunpack.c.l.b16 %v27
    %v163 = vunpack.c.l.b16 %v28
    %v164 = vunpack.c.l.b16 %v29
    %v165 = vunpack.c.l.b16 %v30
    %v166 = vunpack.c.l.b16 %v31
    %v167 = vunpack.c.l.b16 %v32
    %v168 = vunpack.c.l.b16 %v33
    %v169 = vunpack.c.l.b16 %v34
    %v170 = vunpack.c.l.b16 %v35
    %v171 = vunpack.c.l.b16 %v36
    %v172 = vunpack.c.l.b16 %v37
    %v173 = vpack.c.b16 %v158, %v157
    %v174 = vpack.c.b16 %v160, %v159
    %v175 = vpack.c.b16 %v162, %v161
    %v176 = vpack.c.b16 %v164, %v163
    %v177 = vpack.c.b16 %v166, %v165
    %v178 = vpack.c.b16 %v168, %v167
    %v179 = vpack.c.b16 %v170, %v169
    %v180 = vpack.c.b16 %v172, %v171
    %v188 = vunpack.c.l.b16 %v38
    %v189 = vunpack.c.l.b16 %v39
    %v190 = vunpack.c.l.b16 %v40
    %v191 = vunpack.c.l.b16 %v41
    %v192 = vunpack.c.l.b16 %v42
    %v193 = vunpack.c.l.b16 %v43
    %v194 = vunpack.c.l.b16 %v44
    %v195 = vpack.c.b16 %v189, %v188
    %v196 = vpack.c.b16 %v191, %v190
    %v197 = vpack.c.b16 %v193, %v192
    %v198 = vpack.c.b16 %v194, %v194
    %vm202 = vcmask 408576
    %v204 = vsel %vm202, %v173, 0
    %v207 = vsel %vm202, %v174, 0
    %v210 = vsel %vm202, %v175, 0
    %v213 = vsel %vm202, %v176, 0
    %v216 = vsel %vm202, %v177, 0
    %v219 = vsel %vm202, %v178, 0
    %v222 = vsel %vm202, %v179, 0
    %v225 = vsel %vm202, %v180, 0
    %vm227 = vcmask 1040384
    %v229 = vsel %vm227, %v198, 0
    %231 = vmatprep.subr.bf16.mxu0 0
    %232 = vmatpush1.bf16.msra.mxu0 %v195
    %233 = vmatprep.subr.bf16.mxu0 0
    %234 = vmatpush1.bf16.msra.mxu0 %v196
    %235 = vmatprep.subr.bf16.mxu0 0
    %236 = vmatpush1.bf16.msra.mxu0 %v197
    %237 = vmatprep.subr.bf16.mxu0 0
    %238 = vmatpush1.bf16.msra.mxu0 %v229
    %239 = vmatprep.subr.bf16.mxu0 0
    %240 = vmatpush1.bf16.msra.mxu0 0
    %241 = vmatprep.subr.bf16.mxu0 0
    %242 = vmatpush1.bf16.msra.mxu0 0
    %243 = vmatprep.subr.bf16.mxu0 0
    %244 = vmatpush1.bf16.msra.mxu0 0
    %245 = vmatprep.subr.bf16.mxu0 0
    %246 = vmatpush1.bf16.msra.mxu0 0
    %247 = vmatprep.subr.bf16.mxu0 0
    %248 = vmatpush1.bf16.msra.mxu0 0
    %249 = vmatprep.subr.bf16.mxu0 0
    %250 = vmatpush1.bf16.msra.mxu0 0
    %251 = vmatprep.subr.bf16.mxu0 0
    %252 = vmatpush1.bf16.msra.mxu0 0
    %253 = vmatprep.subr.bf16.mxu0 0
    %254 = vmatpush1.bf16.msra.mxu0 0
    %255 = vmatprep.subr.bf16.mxu0 0
    %256 = vmatpush1.bf16.msra.mxu0 0
    %257 = vmatprep.subr.bf16.mxu0 0
    %258 = vmatpush1.bf16.msra.mxu0 0
    %259 = vmatprep.subr.bf16.mxu0 0
    %260 = vmatpush1.bf16.msra.mxu0 0
    %261 = vmatprep.subr.bf16.mxu0 0
    %262 = vmatpush1.bf16.msra.mxu0 0
    %263 = vmatprep.mubr.bf16.mxu0 0
    %264 = vmatmul.mubr.bf16.gmra.mrb[0].mxu0 %v204
    %v265 = vpop.f32.mrb[0].mxu0
    %v266 = vadd.f32 %v64, %v265
    %v267 = vpop.f32.mrb[0].mxu0
    %v268 = vpop.f32.mrb[0].mxu0
    %v269 = vadd.f32 %v69, %v268
    %v270 = vpop.f32.mrb[0].mxu0
    %271 = vmatprep.mubr.bf16.mxu0 0
    %272 = vmatmul.mubr.bf16.gmra.mrb[0].mxu0 %v207
    %v273 = vpop.f32.mrb[0].mxu0
    %v274 = vadd.f32 %v74, %v273
    %v275 = vpop.f32.mrb[0].mxu0
    %v276 = vpop.f32.mrb[0].mxu0
    %v277 = vadd.f32 %v79, %v276
    %v278 = vpop.f32.mrb[0].mxu0
    %279 = vmatprep.mubr.bf16.mxu0 0
    %280 = vmatmul.mubr.bf16.gmra.mrb[0].mxu0 %v210
    %v281 = vpop.f32.mrb[0].mxu0
    %v282 = vadd.f32 %v84, %v281
    %v283 = vpop.f32.mrb[0].mxu0
    %v284 = vpop.f32.mrb[0].mxu0
    %v285 = vadd.f32 %v89, %v284
    %v286 = vpop.f32.mrb[0].mxu0
    %287 = vmatprep.mubr.bf16.mxu0 0
    %288 = vmatmul.mubr.bf16.gmra.mrb[0].mxu0 %v213
    %v289 = vpop.f32.mrb[0].mxu0
    %v290 = vadd.f32 %v94, %v289
    %v291 = vpop.f32.mrb[0].mxu0
    %v292 = vpop.f32.mrb[0].mxu0
    %v293 = vadd.f32 %v99, %v292
    %v294 = vpop.f32.mrb[0].mxu0
    %295 = vmatprep.mubr.bf16.mxu0 0
    %296 = vmatmul.mubr.bf16.gmra.mrb[0].mxu0 %v216
    %v297 = vpop.f32.mrb[0].mxu0
    %v298 = vadd.f32 %v104, %v297
    %v299 = vpop.f32.mrb[0].mxu0
    %v300 = vpop.f32.mrb[0].mxu0
    %v301 = vadd.f32 %v109, %v300
    %v302 = vpop.f32.mrb[0].mxu0
    %303 = vmatprep.mubr.bf16.mxu0 0
    %304 = vmatmul.mubr.bf16.gmra.mrb[0].mxu0 %v219
    %v305 = vpop.f32.mrb[0].mxu0
    %v306 = vadd.f32 %v114, %v305
    %v307 = vpop.f32.mrb[0].mxu0
    %v308 = vpop.f32.mrb[0].mxu0
    %v309 = vadd.f32 %v119, %v308
    %v310 = vpop.f32.mrb[0].mxu0
    %311 = vmatprep.mubr.bf16.mxu0 0
    %312 = vmatmul.mubr.bf16.gmra.mrb[0].mxu0 %v222
    %v313 = vpop.f32.mrb[0].mxu0
    %v314 = vadd.f32 %v124, %v313
    %v315 = vpop.f32.mrb[0].mxu0
    %v316 = vpop.f32.mrb[0].mxu0
    %v317 = vadd.f32 %v129, %v316
    %v318 = vpop.f32.mrb[0].mxu0
    %319 = vmatprep.mubr.bf16.mxu0 0
    %320 = vmatmul.mubr.bf16.gmra.mrb[0].mxu0 %v225
    %v321 = vpop.f32.mrb[0].mxu0
    %v322 = vadd.f32 %v134, %v321
    %v323 = vpop.f32.mrb[0].mxu0
    %v324 = vpop.f32.mrb[0].mxu0
    %v325 = vadd.f32 %v139, %v324
    %v326 = vpop.f32.mrb[0].mxu0
    %327 = vdwg.mxu0
    %v328 = vmax.f32 %v266, 0.0
    %v329 = vmax.f32 %v269, 0.0
    %v330 = vmax.f32 %v274, 0.0
    %v331 = vmax.f32 %v277, 0.0
    %v332 = vmax.f32 %v282, 0.0
    %v333 = vmax.f32 %v285, 0.0
    %v334 = vmax.f32 %v290, 0.0
    %v335 = vmax.f32 %v293, 0.0
    %v336 = vmax.f32 %v298, 0.0
    %v337 = vmax.f32 %v301, 0.0
    %v338 = vmax.f32 %v306, 0.0
    %v339 = vmax.f32 %v309, 0.0
    %v340 = vmax.f32 %v314, 0.0
    %v341 = vmax.f32 %v317, 0.0
    %v342 = vmax.f32 %v322, 0.0
    %v343 = vmax.f32 %v325, 0.0
    %v344 = vld [vmem:[%s3] sm:$0xf]
    %v345 = vld [vmem:[%s3 + $0x4] sm:$0xf]
    %v346 = vld [vmem:[%s3 + $0x8] sm:$0xf]
    %v347 = vld [vmem:[%s3 + $0xc] sm:$0xf]
    %v348 = vld [vmem:[%s3 + $0x10] sm:$0xf]
    %v349 = vld [vmem:[%s3 + $0x14] sm:$0xf]
    %v350 = vld [vmem:[%s3 + $0x18] sm:$0x1]
    %v351 = vpack.c.bf16 %v329, %v328
    %v352 = vpack.c.bf16 %v331, %v330
    %v353 = vpack.c.bf16 %v333, %v332
    %v354 = vpack.c.bf16 %v335, %v334
    %v355 = vpack.c.bf16 %v337, %v336
    %v356 = vpack.c.bf16 %v339, %v338
    %v357 = vpack.c.bf16 %v341, %v340
    %v358 = vpack.c.bf16 %v343, %v342
    %v359 = vld [vmem:[%s4] sm:$0xff]
    %v360 = vld [vmem:[%s4 + $0x8] sm:$0xff]
    %v361 = vld [vmem:[%s4 + $0x10] sm:$0xff]
    %v362 = vld [vmem:[%s4 + $0x18] sm:$0xff]
    %v363 = vld [vmem:[%s4 + $0x20] sm:$0xff]
    %v364 = vld [vmem:[%s4 + $0x28] sm:$0xff]
    %v365 = vld [vmem:[%s4 + $0x30] sm:$0x3]
    %367 = vset.pattern.permute.xlu0 0
    %368 = vperm.xlu0 %367, %v359
    %v369 = vpop.permute.xlu0 %368
    %372 = vset.pattern.permute.xlu0 0
    %373 = vperm.xlu0 %372, %v360
    %v374 = vpop.permute.xlu0 %373
    %377 = vset.pattern.permute.xlu0 0
    %378 = vperm.xlu0 %377, %v361
    %v379 = vpop.permute.xlu0 %378
    %382 = vset.pattern.permute.xlu0 0
    %383 = vperm.xlu0 %382, %v362
    %v384 = vpop.permute.xlu0 %383
    %387 = vset.pattern.permute.xlu0 0
    %388 = vperm.xlu0 %387, %v363
    %v389 = vpop.permute.xlu0 %388
    %392 = vset.pattern.permute.xlu0 0
    %393 = vperm.xlu0 %392, %v364
    %v394 = vpop.permute.xlu0 %393
    %397 = vset.pattern.permute.xlu0 0
    %398 = vperm.xlu0 %397, %v365
    %v399 = vpop.permute.xlu0 %398
    %v408 = vunpack.c.l.b16 %v344
    %v409 = vunpack.c.l.b16 %v345
    %v410 = vunpack.c.l.b16 %v346
    %v411 = vunpack.c.l.b16 %v347
    %v412 = vunpack.c.l.b16 %v348
    %v413 = vunpack.c.l.b16 %v349
    %v414 = vunpack.c.l.b16 %v350
    %v415 = vpack.c.b16 %v409, %v408
    %v416 = vpack.c.b16 %v411, %v410
    %v417 = vpack.c.b16 %v413, %v412
    %v418 = vpack.c.b16 %v414, %v414
    %423 = vmatprep.subr.bf16.mxu0 0
    %424 = vmatpush1.bf16.msra.mxu0 %v351
    %425 = vmatprep.subr.bf16.mxu0 0
    %426 = vmatpush1.bf16.msra.mxu0 %v352
    %427 = vmatprep.subr.bf16.mxu0 0
    %428 = vmatpush1.bf16.msra.mxu0 %v353
    %429 = vmatprep.subr.bf16.mxu0 0
    %430 = vmatpush1.bf16.msra.mxu0 %v354
    %431 = vmatprep.subr.bf16.mxu0 0
    %432 = vmatpush1.bf16.msra.mxu0 %v355
    %433 = vmatprep.subr.bf16.mxu0 0
    %434 = vmatpush1.bf16.msra.mxu0 %v356
    %435 = vmatprep.subr.bf16.mxu0 0
    %436 = vmatpush1.bf16.msra.mxu0 %v357
    %437 = vmatprep.subr.bf16.mxu0 0
    %438 = vmatpush1.bf16.msra.mxu0 %v358
    %439 = vmatprep.subr.bf16.mxu0 0
    %440 = vmatpush1.bf16.msra.mxu0 0
    %441 = vmatprep.subr.bf16.mxu0 0
    %442 = vmatpush1.bf16.msra.mxu0 0
    %443 = vmatprep.subr.bf16.mxu0 0
    %444 = vmatpush1.bf16.msra.mxu0 0
    %445 = vmatprep.subr.bf16.mxu0 0
    %446 = vmatpush1.bf16.msra.mxu0 0
    %447 = vmatprep.subr.bf16.mxu0 0
    %448 = vmatpush1.bf16.msra.mxu0 0
    %449 = vmatprep.subr.bf16.mxu0 0
    %450 = vmatpush1.bf16.msra.mxu0 0
    %451 = vmatprep.subr.bf16.mxu0 0
    %452 = vmatpush1.bf16.msra.mxu0 0
    %453 = vmatprep.subr.bf16.mxu0 0
    %454 = vmatpush1.bf16.msra.mxu0 0
    %455 = vmatprep.mubr.bf16.mxu0 0
    %456 = vmatmul.mubr.bf16.gmra.mrb[0].mxu0 %v415
    %v457 = vpop.f32.mrb[0].mxu0
    %v458 = vadd.f32 %v369, %v457
    %v459 = vpop.f32.mrb[0].mxu0
    %v460 = vpop.f32.mrb[0].mxu0
    %v461 = vadd.f32 %v374, %v460
    %v462 = vpop.f32.mrb[0].mxu0
    %463 = vmatprep.mubr.bf16.mxu0 0
    %464 = vmatmul.mubr.bf16.gmra.mrb[0].mxu0 %v416
    %v465 = vpop.f32.mrb[0].mxu0
    %v466 = vadd.f32 %v379, %v465
    %v467 = vpop.f32.mrb[0].mxu0
    %v468 = vpop.f32.mrb[0].mxu0
    %v469 = vadd.f32 %v384, %v468
    %v470 = vpop.f32.mrb[0].mxu0
    %471 = vmatprep.mubr.bf16.mxu0 0
    %472 = vmatmul.mubr.bf16.gmra.mrb[0].mxu0 %v417
    %v473 = vpop.f32.mrb[0].mxu0
    %v474 = vadd.f32 %v389, %v473
    %v475 = vpop.f32.mrb[0].mxu0
    %v476 = vpop.f32.mrb[0].mxu0
    %v477 = vadd.f32 %v394, %v476
    %v478 = vpop.f32.mrb[0].mxu0
    %479 = vmatprep.mubr.bf16.mxu0 0
    %480 = vmatmul.mubr.bf16.gmra.mrb[0].mxu0 %v418
    %v481 = vpop.f32.mrb[0].mxu0
    %v482 = vadd.f32 %v399, %v481
    %v483 = vpop.f32.mrb[0].mxu0
    %v484 = vpop.f32.mrb[0].mxu0
    %v485 = vpop.f32.mrb[0].mxu0
    %486 = vdwg.mxu0
    %v487 = vpack.c.bf16 %v461, %v458
    %v488 = vpack.c.bf16 %v469, %v466
    %v489 = vpack.c.bf16 %v477, %v474
    %v490 = vpack.c.bf16 %v482, %v482
    %v495 = vunpack.c.l.b16 %v487
    %v496 = vunpack.c.h.b16 %v487
    %v497 = vunpack.c.l.b16 %v488
    %v498 = vunpack.c.h.b16 %v488
    %v499 = vunpack.c.l.b16 %v489
    %v500 = vunpack.c.h.b16 %v489
    %v501 = vunpack.c.l.b16 %v490
    %v502 = vpack.c.b16 %v495, %v495
    %v503 = vpack.c.b16 %v496, %v496
    %v504 = vpack.c.b16 %v497, %v497
    %v505 = vpack.c.b16 %v498, %v498
    %v506 = vpack.c.b16 %v499, %v499
    %v507 = vpack.c.b16 %v500, %v500
    %v508 = vpack.c.b16 %v501, %v501
    %516 = vst [vmem:[#allocation2] sm:$0xf] %v502
    %517 = vst [vmem:[#allocation2 + $0x4] sm:$0xf] %v503
    %518 = vst [vmem:[#allocation2 + $0x8] sm:$0xf] %v504
    %519 = vst [vmem:[#allocation2 + $0xc] sm:$0xf] %v505
    %520 = vst [vmem:[#allocation2 + $0x10] sm:$0xf] %v506
    %521 = vst [vmem:[#allocation2 + $0x14] sm:$0xf] %v507
    %522 = vst [vmem:[#allocation2 + $0x18] sm:$0x1] %v508
    // Predicated region
    $region22: #{tpu_custom_call.1} parent=1 // pred_check
      _
    $region23: #{tpu_custom_call.1} parent=1 // pred_check_branch
      %524 = sbr.rel (0) target = $region25
    $region24: #{tpu_custom_call.1} parent=1 // pred_region
      %s526 = ssub.s32 448, 448
      %527 = vsyncadd [#allocation3], %s526
      %s528 = sshll.u32 [#allocation2], 4
      %s529 = int_to_ptr.vmem [resolvable:$true] %s528
      %534 = dma.vmem_to_hbm [thread:$0]  %s529, 448, %s5, [#allocation3], 64, 64, 4
    $region25: #{tpu_custom_call.1} parent=1 // pred_fallthru
      _
    // Predicated region
    $region26: #{tpu_custom_call.1} parent=1 // pred_check
      _
    $region27: #{tpu_custom_call.1} parent=1 // pred_check_branch
      %536 = sbr.rel (0) target = $region29
    $region28: #{tpu_custom_call.1} parent=1 // pred_region
      %537 = dma.done [#allocation3], 448
    $region29: #{tpu_custom_call.1} parent=1 // pred_fallthru
      _
    %538 = vsyncpa [#allocation3], 1

</llo_original>
